<compile_context>
chip_gen: v6e
topology: v6e:2x2x1
jax: 0.10.0
libtpu: 0.0.40
codegen_flags: <defaults>
</compile_context>

<pallas_src>
import functools

import jax
import jax.numpy as jnp
from jax.experimental import pallas as pl
from jax.experimental.pallas import tpu as pltpu


def _round_up(x, m):
    return ((x + m - 1) // m) * m


# --------------------------------------------------------------------------- #
# One-time capability probes (run eagerly, outside any jit trace).
# --------------------------------------------------------------------------- #
def _probe_buffered_one():
    """pl.Buffered(1) single-buffers grid-constant operands (halves their VMEM);
    probe once so an unsupported jax build just falls back to the default."""
    try:
        def k(x_ref, o_ref):
            o_ref[...] = x_ref[...] + 1.0

        x = jnp.zeros((8, 128), jnp.float32)
        out = pl.pallas_call(
            k,
            out_shape=jax.ShapeDtypeStruct((8, 128), jnp.float32),
            grid=(2,),
            in_specs=[pl.BlockSpec((8, 128), lambda i: (0, 0),
                                   pipeline_mode=pl.Buffered(1))],
            out_specs=pl.BlockSpec((8, 128), lambda i: (0, 0)),
        )(x)
        jax.block_until_ready(out)
        return bool(jnp.allclose(out, 1.0))
    except Exception:
        return False


_BUFFERED1_OK = _probe_buffered_one()


@functools.lru_cache(maxsize=None)
def _tpu_kind():
    try:
        return jax.devices()[0].device_kind.lower()
    except Exception:
        return ""


@functools.lru_cache(maxsize=None)
def _vmem_capacity_bytes():
    try:
        return int(pltpu.get_tpu_info().vmem_capacity_bytes)
    except Exception:
        # v7x has 64 MiB of VMEM per TensorCore; v5e/v6e have 128 MiB.
        return (64 << 20) if "v7" in _tpu_kind() else (128 << 20)


# --------------------------------------------------------------------------- #
# Prologue kernel (column-tiled): text projection + L2 norm + logit_scale fold,
# output laid out pre-transposed as [D_emb_p, Nt_p] in bf16.
# --------------------------------------------------------------------------- #
def _text_embed_kernel(scale_ref, txt_t_ref, w_txt_t_ref, out_ref):
    # w_txt_t_ref: [D_p, Dt_p] bf16 (resident), txt_t_ref: [Dt_p, TN] bf16 tile.
    emb_t = jnp.dot(w_txt_t_ref[...], txt_t_ref[...],
                    preferred_element_type=jnp.float32)            # [D_p, TN] f32
    inv_norm = jax.lax.rsqrt(
        jnp.sum(emb_t * emb_t, axis=0, keepdims=True) + 1e-12)     # [1, TN]
    out_ref[...] = (emb_t * (inv_norm * scale_ref[0, 0])).astype(out_ref.dtype)


# --------------------------------------------------------------------------- #
# Main kernel, grid = (image-row tiles, text-column tiles).
# Image projection + L2 norm is computed once per row tile (cached in scratch);
# per text tile: similarity matmul, bias add (mask + fixed max bound), exp, and
# denominator accumulation.  Single text tile -> normalize in place.
# --------------------------------------------------------------------------- #
def _make_similarity_kernel(exp_dtype, normalize_inline):
    def kernel(img_ref, w_img_ref, txt_t_ref, bias_ref, out_ref, denom_ref,
               img_cache):
        j = pl.program_id(1)

        @pl.when(j == 0)
        def _():
            # Image projection (MXU, bf16 in / f32 accumulate) + L2 norm,
            # cached for all text tiles of this row tile.
            img_emb = jnp.dot(img_ref[...], w_img_ref[...],
                              preferred_element_type=jnp.float32)   # [TM, D_p]
            inv_norm = jax.lax.rsqrt(
                jnp.sum(img_emb * img_emb, axis=-1, keepdims=True) + 1e-12)
            img_cache[...] = (img_emb * inv_norm).astype(img_cache.dtype)
            denom_ref[...] = jnp.zeros_like(denom_ref)

        # logits = logit_scale * img_n @ txt_n.T  (scale folded into txt table)
        logits = jnp.dot(img_cache[...], txt_t_ref[...],
                         preferred_element_type=jnp.float32)        # [TM, TN] f32
        # bias row folds the padded-column mask (-1e30) and the fixed softmax
        # max bound (-logit_scale; valid since both embeddings are unit-norm)
        # into a single broadcast add.
        x = logits + bias_ref[...]
        # exp on the EUP; bf16 on v6e/v7x (bf16 EUP), f32 on older chips.
        e = jnp.exp(x.astype(exp_dtype)).astype(jnp.float32)
        denom_ref[...] += jnp.sum(e, axis=-1, keepdims=True)

        if normalize_inline:
            # single text tile: denominator is already complete.
            out_ref[...] = e * pl.reciprocal(denom_ref[...], approx=True)
        else:
            # multi tile: store stabilized exp; normalized in the epilogue.
            out_ref[...] = e

    return kernel


def _normalize_kernel(e_ref, denom_ref, probs_ref):
    probs_ref[...] = e_ref[...] * pl.reciprocal(denom_ref[...], approx=True)


# --------------------------------------------------------------------------- #
# Wrapper
# --------------------------------------------------------------------------- #
def clip_probs(img_feats, txt_feats, w_img, w_txt, logit_scale):
    """img_feats: [Ni, Dv], txt_feats: [Nt, Dt], w_img: [Dv, D], w_txt: [Dt, D]."""
    n_img, d_vis = img_feats.shape
    n_txt, d_txt = txt_feats.shape
    d_emb = w_img.shape[1]

    # lane/sublane padding
    d_vis_p = _round_up(d_vis, 128)
    d_txt_p = _round_up(d_txt, 128)
    d_emb_p = _round_up(d_emb, 128)
    n_txt_p = _round_up(n_txt, 128)

    # text-axis tile (biggest of 1024/512/256/128 that divides Nt_p)
    tile_n = max(t for t in (1024, 512, 256, 128) if n_txt_p % t == 0)
    n_txt_tiles = n_txt_p // tile_n
    single_tile = n_txt_tiles == 1

    kind = _tpu_kind()
    is_v6_plus = ("v6" in kind) or ("v7" in kind)
    is_v7 = "v7" in kind
    vmem_budget = _vmem_capacity_bytes() - (8 << 20)   # headroom for Mosaic scratch
    w_img_bufs = 1 if _BUFFERED1_OK else 2

    def vmem_estimate(tm):
        return (2 * tm * d_vis_p * 2                    # image tile (bf16, 2 bufs)
                + w_img_bufs * d_vis_p * d_emb_p * 2    # visual projection
                + 2 * d_emb_p * tile_n * 2              # text-table tile (bf16)
                + 2 * 8 * tile_n * 4                    # bias row
                + 2 * tm * tile_n * 4                   # e/probs tile (f32, 2 bufs)
                + 2 * tm * 4                            # denom accumulator
                + tm * d_emb_p * 2                      # image-embedding scratch
                + tm * (d_emb_p + 2 * tile_n) * 4       # in-kernel temporaries
                + (4 << 20))                            # slack

    # image-row tile: 16-granularity for tiny batches (bf16 packs 16 sublanes),
    # 128 default, 256 on v6e/v7x (2x256^2 MXU) when it fits VMEM and keeps
    # >= 2 row steps on v7x so both TensorCores get work.
    if n_img < 128:
        tile_m = max(16, _round_up(n_img, 16))
    else:
        tile_m = 128
        if is_v6_plus and n_img >= 256:
            rows_256 = _round_up(n_img, 256) // 256
            if (vmem_estimate(256) <= vmem_budget
                    and not (is_v7 and rows_256 < 2)):
                tile_m = 256
    n_img_p = _round_up(n_img, tile_m)
    n_row_tiles = n_img_p // tile_m

    vmem_limit = int(min(max(vmem_estimate(tile_m), 32 << 20), vmem_budget))

    # bf16 exp on v6e/v7x (bf16 EUP); f32 elsewhere (v5e has no bf16 EUP).
    exp_dtype = jnp.bfloat16 if is_v6_plus else jnp.float32

    bf16 = jnp.bfloat16

    def pad2(x, rows, cols):
        return jnp.pad(x.astype(bf16),
                       ((0, rows - x.shape[0]), (0, cols - x.shape[1])))

    img_p = pad2(img_feats, n_img_p, d_vis_p)        # [Ni_p, Dv_p]
    w_img_p = pad2(w_img, d_vis_p, d_emb_p)          # [Dv_p, D_p]
    txt_t_p = pad2(txt_feats.T, d_txt_p, n_txt_p)    # [Dt_p, Nt_p]
    w_txt_t_p = pad2(w_txt.T, d_emb_p, d_txt_p)      # [D_p, Dt_p]

    scale_f32 = jnp.asarray(logit_scale, jnp.float32)
    scale = jnp.reshape(scale_f32, (1, 1))

    # Additive bias row: padded-column mask (-1e30) + fixed max bound (-scale).
    col = jnp.arange(n_txt_p, dtype=jnp.int32)
    bias_row = (jnp.where(col < n_txt, 0.0, -1e30).astype(jnp.float32)
                - scale_f32).reshape(1, n_txt_p)

    def const_spec(shape, index_map):
        if _BUFFERED1_OK:
            return pl.BlockSpec(shape, index_map, pipeline_mode=pl.Buffered(1))
        return pl.BlockSpec(shape, index_map)

    # --- prologue: text projection + norm + scale fold, column-tiled ---
    txt_n_t = pl.pallas_call(
        _text_embed_kernel,
        out_shape=jax.ShapeDtypeStruct((d_emb_p, n_txt_p), bf16),
        grid=(n_txt_tiles,),
        in_specs=[
            pl.BlockSpec(memory_space=pltpu.MemorySpace.SMEM),    # logit_scale
            pl.BlockSpec((d_txt_p, tile_n), lambda j: (0, j)),    # txt feats^T tile
            const_spec((d_emb_p, d_txt_p), lambda j: (0, 0)),     # w_txt^T (resident)
        ],
        out_specs=pl.BlockSpec((d_emb_p, tile_n), lambda j: (0, j)),
        compiler_params=pltpu.CompilerParams(
            dimension_semantics=("parallel",),
            vmem_limit_bytes=vmem_limit),
    )(scale, txt_t_p, w_txt_t_p)

    cost = pl.CostEstimate(
        flops=int(2 * n_img_p * d_vis_p * d_emb_p
                  + 2 * n_img_p * d_emb_p * n_txt_p),
        transcendentals=int(n_img_p * n_txt_p),
        bytes_accessed=int(n_img_p * d_vis_p * 2 + d_vis_p * d_emb_p * 2
                           + d_emb_p * n_txt_p * 2 + n_txt_p * 4
                           + n_img_p * n_txt_p * 4 + n_img_p * 4),
    )

    # --- main kernel: projection (cached) + similarity + exp + denominator ---
    e_or_probs, denom = pl.pallas_call(
        _make_similarity_kernel(exp_dtype, single_tile),
        out_shape=(jax.ShapeDtypeStruct((n_img_p, n_txt_p), jnp.float32),
                   jax.ShapeDtypeStruct((n_img_p, 1), jnp.float32)),
        grid=(n_row_tiles, n_txt_tiles),
        in_specs=[
            pl.BlockSpec((tile_m, d_vis_p), lambda i, j: (i, 0)),   # image tile
            const_spec((d_vis_p, d_emb_p), lambda i, j: (0, 0)),    # visual projection
            pl.BlockSpec((d_emb_p, tile_n), lambda i, j: (0, j)),   # scaled text^T tile
            pl.BlockSpec((1, tile_n), lambda i, j: (0, j)),         # bias row tile
        ],
        out_specs=(pl.BlockSpec((tile_m, tile_n), lambda i, j: (i, j)),
                   pl.BlockSpec((tile_m, 1), lambda i, j: (i, 0))),
        scratch_shapes=[pltpu.VMEM((tile_m, d_emb_p), bf16)],
        compiler_params=pltpu.CompilerParams(
            # "parallel" row axis lets megacore shard rows across TensorCores.
            dimension_semantics=("parallel", "arbitrary"),
            vmem_limit_bytes=vmem_limit),
        cost_estimate=cost,
    )(img_p, w_img_p, txt_n_t, bias_row)

    if single_tile:
        probs_p = e_or_probs
    else:
        # --- epilogue: probs = e * 1/denom (per-row), tiled elementwise ---
        probs_p = pl.pallas_call(
            _normalize_kernel,
            out_shape=jax.ShapeDtypeStruct((n_img_p, n_txt_p), jnp.float32),
            grid=(n_row_tiles, n_txt_tiles),
            in_specs=[pl.BlockSpec((tile_m, tile_n), lambda i, j: (i, j)),
                      pl.BlockSpec((tile_m, 1), lambda i, j: (i, 0))],
            out_specs=pl.BlockSpec((tile_m, tile_n), lambda i, j: (i, j)),
            compiler_params=pltpu.CompilerParams(
                dimension_semantics=("parallel", "arbitrary"),
                vmem_limit_bytes=vmem_limit),
        )(e_or_probs, denom)

    return probs_p[:n_img, :n_txt]


def forward(images, text_tokens, params):
    """Mirrors SemanticSearchModel.forward: returns softmax(logits_per_image, dim=1)."""
    # TODO(synk): pretrained CLIP encoders / HF processor replaced by deterministic
    # synthetic feature extractors (flatten + mean-pooled token embeddings).
    b_img = images.shape[0]
    img_feats = images.reshape(b_img, -1).astype(jnp.float32)   # [Ni, C*H*W]
    txt_feats = params["tok_emb"][text_tokens].mean(axis=1)     # [Nt, Dt]
    return clip_probs(img_feats, txt_feats,
                      params["w_img"], params["w_txt"],
                      params["logit_scale"])


if __name__ == "__main__":
    key = jax.random.PRNGKey(0)
    k_img, k_tok, k_tok2, k_emb, k_wimg, k_wtxt = jax.random.split(key, 6)

    # Small shapes consistent with the forward: a batch of images, text prompts.
    B_IMG, C, H, W = 2, 3, 16, 16          # images: NCHW
    VOCAB, D_TXT, SEQ = 128, 32, 8         # toy text hidden size
    D_EMB = 64                             # shared CLIP embedding dim
    D_IMG = C * H * W                      # 768 flattened image features

    images = jax.random.normal(k_img, (B_IMG, C, H, W), jnp.float32)

    params = {
        "tok_emb": 0.02 * jax.random.normal(k_emb, (VOCAB, D_TXT), jnp.float32),
        "w_img": 0.02 * jax.random.normal(k_wimg, (D_IMG, D_EMB), jnp.float32),
        "w_txt": 0.02 * jax.random.normal(k_wtxt, (D_TXT, D_EMB), jnp.float32),
        # CLIP logit_scale is exp(log(1/0.07))
        "logit_scale": jnp.exp(jnp.log(jnp.float32(1.0 / 0.07))),
    }

    fwd = jax.jit(forward)

    def reference(images, text_tokens, params):
        img_f = images.reshape(images.shape[0], -1)
        txt_f = params["tok_emb"][text_tokens].mean(axis=1)
        ie = img_f @ params["w_img"]
        te = txt_f @ params["w_txt"]
        ie = ie / jnp.linalg.norm(ie, axis=-1, keepdims=True)
        te = te / jnp.linalg.norm(te, axis=-1, keepdims=True)
        return jax.nn.softmax(params["logit_scale"] * ie @ te.T, axis=1)

    # Case 1: small candidate set -> single text tile (softmax normalized in-kernel).
    tokens_small = jax.random.randint(k_tok, (8, SEQ), 0, VOCAB)
    # Case 2: larger, non-multiple-of-128 candidate set -> tiled text axis exercising
    # the denominator accumulator + normalization epilogue.
    tokens_large = jax.random.randint(k_tok2, (300, SEQ), 0, VOCAB)

    for tokens in (tokens_small, tokens_large):
        probs = jax.block_until_ready(fwd(images, tokens, params))
        ref = reference(images, tokens, params)
        n_txt = tokens.shape[0]
        assert probs.shape == (B_IMG, n_txt)
        assert bool(jnp.all(jnp.isfinite(probs)))
        assert jnp.allclose(jnp.sum(probs, axis=1), 1.0, atol=5e-3)
        # bf16 MXU feeds + bf16 exp + approx reciprocal -> relaxed tolerance.
        assert jnp.allclose(probs, ref, atol=4e-2, rtol=4e-2)

    print("KERNEL_OK")
</pallas_src>

<mosaic_0001>
module attributes {stable_mosaic.version = 11 : i64} {
  func.func @k(%arg0: i32, %arg1: memref<8x128xf32, #tpu.memory_space<vmem>>, %arg2: memref<8x128xf32, #tpu.memory_space<vmem>>) attributes {dimension_semantics = [#tpu.dimension_semantics<arbitrary>], iteration_bounds = array<i64: 2>, scalar_prefetch = 0 : i64, scratch_operands = 0 : i64, tpu.core_type = #tpu.core_type<tc>, window_params = [{pipeline_mode = #tpu.pipeline_mode<synchronous>, transform_indices = @transform_0, window_bounds = array<i64: 8, 128>}, {pipeline_mode = #tpu.pipeline_mode<synchronous>, transform_indices = @transform_1, window_bounds = array<i64: 8, 128>}]} {
    %c0 = arith.constant 0 : index
    %c0_0 = arith.constant 0 : index
    %0 = vector.load %arg1[%c0, %c0_0] : memref<8x128xf32, #tpu.memory_space<vmem>>, vector<8x128xf32>
    %cst = arith.constant 1.000000e+00 : f32
    %1 = vector.broadcast %cst : f32 to vector<8x128xf32>
    %2 = arith.addf %0, %1 : vector<8x128xf32>
    %c0_1 = arith.constant 0 : index
    %c0_2 = arith.constant 0 : index
    %3 = vector.load %arg2[%c0_1, %c0_2] : memref<8x128xf32, #tpu.memory_space<vmem>>, vector<8x128xf32>
    tpu.vector_store %arg2[%c0_1, %c0_2], %2 {strides = array<i32>} : memref<8x128xf32, #tpu.memory_space<vmem>>, vector<8x128xf32>,
    return
  }
  func.func @transform_0(%arg0: i32) -> (i32, i32) {
    %c0_i32 = arith.constant 0 : i32
    %c0_i32_0 = arith.constant 0 : i32
    %c0_i32_1 = arith.constant 0 : i32
    return %c0_i32, %c0_i32_0 : i32, i32
  }
  func.func @transform_1(%arg0: i32) -> (i32, i32) {
    %c0_i32 = arith.constant 0 : i32
    %c0_i32_0 = arith.constant 0 : i32
    %c0_i32_1 = arith.constant 0 : i32
    return %c0_i32, %c0_i32_0 : i32, i32
  }
}

module attributes {stable_mosaic.version = 11 : i64} {
  func.func @_text_embed_kernel(%arg0: i32, %arg1: memref<1x1xf32, #tpu.memory_space<smem>>, %arg2: memref<128x128xbf16, #tpu.memory_space<vmem>>, %arg3: memref<128x128xbf16, #tpu.memory_space<vmem>>, %arg4: memref<128x128xbf16, #tpu.memory_space<vmem>>) attributes {dimension_semantics = [#tpu.dimension_semantics<parallel>], iteration_bounds = array<i64: 1>, scalar_prefetch = 0 : i64, scratch_operands = 0 : i64, tpu.core_type = #tpu.core_type<tc>, window_params = [{transform_indices = @transform_0, window_bounds = array<i64: 1, 1>}, {transform_indices = @transform_1, window_bounds = array<i64: 128, 128>}, {pipeline_mode = #tpu.pipeline_mode<synchronous>, transform_indices = @transform_2, window_bounds = array<i64: 128, 128>}, {transform_indices = @transform_3, window_bounds = array<i64: 128, 128>}]} {
    %c0 = arith.constant 0 : index
    %c0_0 = arith.constant 0 : index
    %0 = vector.load %arg3[%c0, %c0_0] : memref<128x128xbf16, #tpu.memory_space<vmem>>, vector<128x128xbf16>
    %c0_1 = arith.constant 0 : index
    %c0_2 = arith.constant 0 : index
    %1 = vector.load %arg2[%c0_1, %c0_2] : memref<128x128xbf16, #tpu.memory_space<vmem>>, vector<128x128xbf16>
    %cst = arith.constant dense<0.000000e+00> : vector<128x128xf32>
    %2 = tpu.matmul %0, %1, %cst {dimension_numbers = #tpu.dot_dimension_numbers<[1], [0], [0], [1], [0, 0, 1, 1], [], []>} : vector<128x128xbf16>, vector<128x128xbf16>, vector<128x128xf32> -> vector<128x128xf32>
    %3 = arith.mulf %2, %2 : vector<128x128xf32>
    %cst_3 = arith.constant dense<0.000000e+00> : vector<128xf32>
    %4 = vector.multi_reduction <add>, %3, %cst_3 [0] : vector<128x128xf32> to vector<128xf32>
    %5 = vector.shape_cast %4 : vector<128xf32> to vector<1x128xf32>
    %cst_4 = arith.constant 9.99999996E-13 : f32
    %6 = vector.broadcast %cst_4 : f32 to vector<1x128xf32>
    %7 = arith.addf %5, %6 : vector<1x128xf32>
    %8 = math.rsqrt %7 : vector<1x128xf32>
    %c0_5 = arith.constant 0 : index
    %c0_6 = arith.constant 0 : index
    %9 = memref.load %arg1[%c0_5, %c0_6] : memref<1x1xf32, #tpu.memory_space<smem>>
    %10 = vector.broadcast %9 : f32 to vector<1x128xf32>
    %11 = arith.mulf %8, %10 : vector<1x128xf32>
    %12 = vector.broadcast %11 : vector<1x128xf32> to vector<128x128xf32>
    %13 = arith.mulf %2, %12 : vector<128x128xf32>
    %14 = arith.truncf %13 : vector<128x128xf32> to vector<128x128xbf16>
    %c0_7 = arith.constant 0 : index
    %c0_8 = arith.constant 0 : index
    %15 = vector.load %arg4[%c0_7, %c0_8] : memref<128x128xbf16, #tpu.memory_space<vmem>>, vector<128x128xbf16>
    tpu.vector_store %arg4[%c0_7, %c0_8], %14 {strides = array<i32>} : memref<128x128xbf16, #tpu.memory_space<vmem>>, vector<128x128xbf16>,
    return
  }
  func.func @transform_0(%arg0: i32) -> (i32, i32) {
    %c0_i32 = arith.constant 0 : i32
    %c0_i32_0 = arith.constant 0 : i32
    %c0_i32_1 = arith.constant 0 : i32
    return %c0_i32, %c0_i32_0 : i32, i32
  }
  func.func @transform_1(%arg0: i32) -> (i32, i32) {
    %c0_i32 = arith.constant 0 : i32
    %c0_i32_0 = arith.constant 0 : i32
    return %c0_i32, %arg0 : i32, i32
  }
  func.func @transform_2(%arg0: i32) -> (i32, i32) {
    %c0_i32 = arith.constant 0 : i32
    %c0_i32_0 = arith.constant 0 : i32
    %c0_i32_1 = arith.constant 0 : i32
    return %c0_i32, %c0_i32_0 : i32, i32
  }
  func.func @transform_3(%arg0: i32) -> (i32, i32) {
    %c0_i32 = arith.constant 0 : i32
    %c0_i32_0 = arith.constant 0 : i32
    return %c0_i32, %arg0 : i32, i32
  }
}

module attributes {stable_mosaic.version = 11 : i64} {
  func.func @kernel(%arg0: i32, %arg1: i32, %arg2: memref<16x768xbf16, #tpu.memory_space<vmem>>, %arg3: memref<768x128xbf16, #tpu.memory_space<vmem>>, %arg4: memref<128x128xbf16, #tpu.memory_space<vmem>>, %arg5: memref<1x128xf32, #tpu.memory_space<vmem>>, %arg6: memref<16x128xf32, #tpu.memory_space<vmem>>, %arg7: memref<16x1xf32, #tpu.memory_space<vmem>>, %arg8: memref<16x128xbf16, #tpu.memory_space<vmem>>) attributes {dimension_semantics = [#tpu.dimension_semantics<parallel>, #tpu.dimension_semantics<arbitrary>], iteration_bounds = array<i64: 1, 1>, scalar_prefetch = 0 : i64, scratch_operands = 1 : i64, tpu.core_type = #tpu.core_type<tc>, window_params = [{transform_indices = @transform_0, window_bounds = array<i64: 16, 768>}, {pipeline_mode = #tpu.pipeline_mode<synchronous>, transform_indices = @transform_1, window_bounds = array<i64: 768, 128>}, {transform_indices = @transform_2, window_bounds = array<i64: 128, 128>}, {transform_indices = @transform_3, window_bounds = array<i64: 1, 128>}, {transform_indices = @transform_4, window_bounds = array<i64: 16, 128>}, {transform_indices = @transform_5, window_bounds = array<i64: 16, 1>}]} {
    %c0_i32 = arith.constant 0 : i32
    %0 = arith.cmpi eq, %arg1, %c0_i32 : i32
    %1 = arith.extui %0 : i1 to i32
    %c0_i32_0 = arith.constant 0 : i32
    %2 = arith.cmpi ne, %1, %c0_i32_0 : i32
    scf.if %2 {
      %c0_15 = arith.constant 0 : index
      %c0_16 = arith.constant 0 : index
      %20 = vector.load %arg2[%c0_15, %c0_16] : memref<16x768xbf16, #tpu.memory_space<vmem>>, vector<16x768xbf16>
      %c0_17 = arith.constant 0 : index
      %c0_18 = arith.constant 0 : index
      %21 = vector.load %arg3[%c0_17, %c0_18] : memref<768x128xbf16, #tpu.memory_space<vmem>>, vector<768x128xbf16>
      %cst_19 = arith.constant dense<0.000000e+00> : vector<16x128xf32>
      %22 = tpu.matmul %20, %21, %cst_19 {dimension_numbers = #tpu.dot_dimension_numbers<[1], [0], [0], [1], [0, 0, 1, 1], [], []>} : vector<16x768xbf16>, vector<768x128xbf16>, vector<16x128xf32> -> vector<16x128xf32>
      %23 = arith.mulf %22, %22 : vector<16x128xf32>
      %cst_20 = arith.constant dense<0.000000e+00> : vector<16xf32>
      %24 = vector.multi_reduction <add>, %23, %cst_20 [1] : vector<16x128xf32> to vector<16xf32>
      %25 = vector.shape_cast %24 : vector<16xf32> to vector<16x1xf32>
      %cst_21 = arith.constant 9.99999996E-13 : f32
      %26 = vector.broadcast %cst_21 : f32 to vector<16x1xf32>
      %27 = arith.addf %25, %26 : vector<16x1xf32>
      %28 = math.rsqrt %27 : vector<16x1xf32>
      %29 = vector.broadcast %28 : vector<16x1xf32> to vector<16x128xf32>
      %30 = arith.mulf %22, %29 : vector<16x128xf32>
      %31 = arith.truncf %30 : vector<16x128xf32> to vector<16x128xbf16>
      %c0_22 = arith.constant 0 : index
      %c0_23 = arith.constant 0 : index
      %32 = vector.load %arg8[%c0_22, %c0_23] : memref<16x128xbf16, #tpu.memory_space<vmem>>, vector<16x128xbf16>
      tpu.vector_store %arg8[%c0_22, %c0_23], %31 {strides = array<i32>} : memref<16x128xbf16, #tpu.memory_space<vmem>>, vector<16x128xbf16>,
      %cst_24 = arith.constant 0.000000e+00 : f32
      %33 = vector.broadcast %cst_24 : f32 to vector<16x1xf32>
      %c0_25 = arith.constant 0 : index
      %c0_26 = arith.constant 0 : index
      %34 = vector.load %arg7[%c0_25, %c0_26] : memref<16x1xf32, #tpu.memory_space<vmem>>, vector<16x1xf32>
      tpu.vector_store %arg7[%c0_25, %c0_26], %33 {strides = array<i32>} : memref<16x1xf32, #tpu.memory_space<vmem>>, vector<16x1xf32>,
    } else {
    }
    %c0 = arith.constant 0 : index
    %c0_1 = arith.constant 0 : index
    %3 = vector.load %arg8[%c0, %c0_1] : memref<16x128xbf16, #tpu.memory_space<vmem>>, vector<16x128xbf16>
    %c0_2 = arith.constant 0 : index
    %c0_3 = arith.constant 0 : index
    %4 = vector.load %arg4[%c0_2, %c0_3] : memref<128x128xbf16, #tpu.memory_space<vmem>>, vector<128x128xbf16>
    %cst = arith.constant dense<0.000000e+00> : vector<16x128xf32>
    %5 = tpu.matmul %3, %4, %cst {dimension_numbers = #tpu.dot_dimension_numbers<[1], [0], [0], [1], [0, 0, 1, 1], [], []>} : vector<16x128xbf16>, vector<128x128xbf16>, vector<16x128xf32> -> vector<16x128xf32>
    %c0_4 = arith.constant 0 : index
    %c0_5 = arith.constant 0 : index
    %6 = vector.load %arg5[%c0_4, %c0_5] : memref<1x128xf32, #tpu.memory_space<vmem>>, vector<1x128xf32>
    %7 = vector.broadcast %6 : vector<1x128xf32> to vector<16x128xf32>
    %8 = arith.addf %5, %7 : vector<16x128xf32>
    %9 = math.exp %8 : vector<16x128xf32>
    %c0_6 = arith.constant 0 : index
    %c0_7 = arith.constant 0 : index
    %10 = vector.load %arg7[%c0_6, %c0_7] : memref<16x1xf32, #tpu.memory_space<vmem>>, vector<16x1xf32>
    %cst_8 = arith.constant dense<0.000000e+00> : vector<16xf32>
    %11 = vector.multi_reduction <add>, %9, %cst_8 [1] : vector<16x128xf32> to vector<16xf32>
    %12 = vector.shape_cast %11 : vector<16xf32> to vector<16x1xf32>
    %13 = arith.addf %10, %12 : vector<16x1xf32>
    %c0_9 = arith.constant 0 : index
    %c0_10 = arith.constant 0 : index
    %14 = vector.load %arg7[%c0_9, %c0_10] : memref<16x1xf32, #tpu.memory_space<vmem>>, vector<16x1xf32>
    tpu.vector_store %arg7[%c0_9, %c0_10], %13 {strides = array<i32>} : memref<16x1xf32, #tpu.memory_space<vmem>>, vector<16x1xf32>,
    %c0_11 = arith.constant 0 : index
    %c0_12 = arith.constant 0 : index
    %15 = vector.load %arg7[%c0_11, %c0_12] : memref<16x1xf32, #tpu.memory_space<vmem>>, vector<16x1xf32>
    %16 = tpu.reciprocal %15 {approx = true} : vector<16x1xf32> -> vector<16x1xf32>
    %17 = vector.broadcast %16 : vector<16x1xf32> to vector<16x128xf32>
    %18 = arith.mulf %9, %17 : vector<16x128xf32>
    %c0_13 = arith.constant 0 : index
    %c0_14 = arith.constant 0 : index
    %19 = vector.load %arg6[%c0_13, %c0_14] : memref<16x128xf32, #tpu.memory_space<vmem>>, vector<16x128xf32>
    tpu.vector_store %arg6[%c0_13, %c0_14], %18 {strides = array<i32>} : memref<16x128xf32, #tpu.memory_space<vmem>>, vector<16x128xf32>,
    return
  }
  func.func @transform_0(%arg0: i32, %arg1: i32) -> (i32, i32) {
    %c0_i32 = arith.constant 0 : i32
    %c0_i32_0 = arith.constant 0 : i32
    return %arg0, %c0_i32 : i32, i32
  }
  func.func @transform_1(%arg0: i32, %arg1: i32) -> (i32, i32) {
    %c0_i32 = arith.constant 0 : i32
    %c0_i32_0 = arith.constant 0 : i32
    %c0_i32_1 = arith.constant 0 : i32
    return %c0_i32, %c0_i32_0 : i32, i32
  }
  func.func @transform_2(%arg0: i32, %arg1: i32) -> (i32, i32) {
    %c0_i32 = arith.constant 0 : i32
    %c0_i32_0 = arith.constant 0 : i32
    return %c0_i32, %arg1 : i32, i32
  }
  func.func @transform_3(%arg0: i32, %arg1: i32) -> (i32, i32) {
    %c0_i32 = arith.constant 0 : i32
    %c0_i32_0 = arith.constant 0 : i32
    return %c0_i32, %arg1 : i32, i32
  }
  func.func @transform_4(%arg0: i32, %arg1: i32) -> (i32, i32) {
    %c0_i32 = arith.constant 0 : i32
    return %arg0, %arg1 : i32, i32
  }
  func.func @transform_5(%arg0: i32, %arg1: i32) -> (i32, i32) {
    %c0_i32 = arith.constant 0 : i32
    %c0_i32_0 = arith.constant 0 : i32
    return %arg0, %c0_i32 : i32, i32
  }
}

</mosaic_0001>

<llo_original>
// kernel: tpu_custom_call.1
$region0: #{tpu_custom_call.1}
  #allocation0 [shape = 'u32[]', space=smem, size = 0x4, offset = 0x4, fixed_abs, tag = 'smem constant byte address 0x4 - core index']
  #allocation1 [shape = 'u32[144,128]{1,0:T(1,128)}', space=vmem, size = 0x12000, scoped, tag = 'internal scratch']
  %s0 = inlined_call_operand.hbm [shape: f32[8,128], index: 0, kind: input, shape index: {}]
  %s1 = inlined_call_operand.hbm [shape: f32[8,128], index: 1, kind: output, shape index: {}]
  %s2 = sld [smem:[#allocation0]]
  $region41: #{tpu_custom_call.1} parent=0
    _
  %s4 = ssub.s32 1, %s2
  %s5 = scalar_select 0, %s4, %s2
  $region1: #{tpu_custom_call.1} parent=0
    #allocation2 [shape = 'u8[4096]{0}', space=vmem, size = 0x1000, scoped, tag = 'input window, operand 0, single buffered']
    #allocation3 [shape = 's32[2]{0}', space=sflag, size = 0x8, scoped, tag = 'scoped memory for tpu_custom_call.1']
    #allocation4 [shape = 's32[2]{0}', space=sflag, size = 0x8, scoped, tag = 'scoped memory for tpu_custom_call.1']
    #allocation5 [shape = 'u8[4096]{0}', space=vmem, size = 0x1000, scoped, tag = 'output window, operand 0, single buffered']
    %6 = vsyncpa [#allocation3], 0
    %7 = vsyncpa [#allocation4], 0
    loop: start=0, step=1, limit=4
    $region2: #{tpu_custom_call.1} parent=1 // loop_pre_header
      _
    $region3: #{tpu_custom_call.1} parent=1 // loop_header
      %s9 = sphi 0, %s13
      %p10 = scmp.ge.s32.totalorder %s9, 4
      %s17 = sphi 0, %s17
      %s19 = sphi 0, %s17
      %s20 = sphi 0, %s19
      %s34 = sphi 0, %s20
      %s38 = sphi 0, %s38
      %s40 = sphi 0, %s38
      %s41 = sphi 0, %s40
      %s55 = sphi 0, %s41
    $region4: #{tpu_custom_call.1} parent=1 // loop_header_branch
      %12 = sbr.rel (%p10) target = $region8
    $region5: #{tpu_custom_call.1} parent=1 // loop_body
      %s14 = ssub.s32 %s9, 1
      %s15 = ssub.s32 %s9, 2
      %s16 = sadd.s32 %s9, 1
      %s18 = sadd.s32 %s17, 1
      %p21 = scmp.eq.s32.totalorder %s9, 1
      %p22 = scmp.ne.s32.totalorder %s17, %s19
      %p23 = scmp.eq.s32.totalorder %s9, 0
      %p24 = por %p22, %p23
      %p25 = scmp.ne.s32.totalorder %s17, %s19
      %p26 = scmp.eq.s32.totalorder %s14, 1
      %p27 = por %p25, %p26
      %p28 = scmp.ne.s32.totalorder %s19, %s20
      %p29 = scmp.eq.s32.totalorder %s14, 0
      %p30 = por %p28, %p29
      %p31 = scmp.ne.s32.totalorder %s19, %s20
      %p32 = scmp.eq.s32.totalorder %s15, 1
      %p33 = por %p31, %p32
      %p35 = scmp.ne.s32.totalorder %s20, %s34
      %p36 = scmp.eq.s32.totalorder %s15, 0
      %p37 = por %p35, %p36
      %s39 = sadd.s32 %s38, 1
      %p42 = scmp.eq.s32.totalorder %s9, 1
      %p43 = scmp.ne.s32.totalorder %s38, %s40
      %p44 = scmp.eq.s32.totalorder %s9, 0
      %p45 = por %p43, %p44
      %p46 = scmp.ne.s32.totalorder %s38, %s40
      %p47 = scmp.eq.s32.totalorder %s14, 1
      %p48 = por %p46, %p47
      %p49 = scmp.ne.s32.totalorder %s40, %s41
      %p50 = scmp.eq.s32.totalorder %s14, 0
      %p51 = por %p49, %p50
      %p52 = scmp.ne.s32.totalorder %s40, %s41
      %p53 = scmp.eq.s32.totalorder %s15, 1
      %p54 = por %p52, %p53
      %p56 = scmp.ne.s32.totalorder %s41, %s55
      %p57 = scmp.eq.s32.totalorder %s15, 0
      %p58 = por %p56, %p57
      %p59 = scmp.le.s32.totalorder 1, %s9
      %p60 = scmp.lt.s32.totalorder %s9, 3
      %p61 = pnand %p59, %p60
      %p62 = pneg %p61
      // Predicated region
      $region9: #{tpu_custom_call.1} parent=5 // pred_check
        _
      $region10: #{tpu_custom_call.1} parent=5 // pred_check_branch
        %64 = sbr.rel (%p61) target = $region12
      $region11: #{tpu_custom_call.1} parent=5 // pred_region
        %s65 = ssub.s32 %s9, 1
        // Predicated region
        $region13: #{tpu_custom_call.1} parent=11 // pred_check
          %p66 = pneg %p30
        $region14: #{tpu_custom_call.1} parent=11 // pred_check_branch
          %68 = sbr.rel (%p66) target = $region16
        $region15: #{tpu_custom_call.1} parent=11 // pred_region
          %s70 = ssub.s32 128, 128
          %71 = vsyncadd [#allocation3], %s70
          %s73 = sshll.u32 [#allocation2], 4
          %s74 = int_to_ptr.vmem [resolvable:$true] %s73
          %76 = dma.hbm_to_vmem [thread:$0]  %s0, 128, %s74, [#allocation3]
        $region16: #{tpu_custom_call.1} parent=11 // pred_fallthru
          _
      $region12: #{tpu_custom_call.1} parent=5 // pred_fallthru
        _
      %p77 = scmp.lt.s32.totalorder %s9, 2
      // Predicated region
      $region17: #{tpu_custom_call.1} parent=5 // pred_check
        %p78 = pneg %p77
      $region18: #{tpu_custom_call.1} parent=5 // pred_check_branch
        %80 = sbr.rel (%p78) target = $region20
      $region19: #{tpu_custom_call.1} parent=5 // pred_region
        _
      $region20: #{tpu_custom_call.1} parent=5 // pred_fallthru
        _
      %p81 = scmp.le.s32.totalorder 1, %s9
      %p82 = scmp.lt.s32.totalorder %s9, 3
      %p83 = pnand %p81, %p82
      %p84 = pneg %p83
      // Predicated region
      $region21: #{tpu_custom_call.1} parent=5 // pred_check
        _
      $region22: #{tpu_custom_call.1} parent=5 // pred_check_branch
        %86 = sbr.rel (%p83) target = $region24
      $region23: #{tpu_custom_call.1} parent=5 // pred_region
        %s87 = ssub.s32 %s9, 1
        // Predicated region
        $region25: #{tpu_custom_call.1} parent=23 // pred_check
          %p88 = pneg %p30
        $region26: #{tpu_custom_call.1} parent=23 // pred_check_branch
          %90 = sbr.rel (%p88) target = $region28
        $region27: #{tpu_custom_call.1} parent=23 // pred_region
          %91 = dma.done [#allocation3], 128
        $region28: #{tpu_custom_call.1} parent=23 // pred_fallthru
          _
        %p92 = pneg %p30
        %p93 = pneg %p27
        %p94 = pneg %p51
        %p95 = pneg %p48
        %v96 = vld [vmem:[#allocation2] sm:$0xff]
        %v97 = vadd.f32 %v96, 1.0
        %98 = vst [vmem:[#allocation5] sm:$0xff] %v97
        // Predicated region
        $region29: #{tpu_custom_call.1} parent=23 // pred_check
          %p99 = pneg %p48
        $region30: #{tpu_custom_call.1} parent=23 // pred_check_branch
          %101 = sbr.rel (%p99) target = $region32
        $region31: #{tpu_custom_call.1} parent=23 // pred_region
          %s103 = ssub.s32 128, 128
          %104 = vsyncadd [#allocation4], %s103
          %s106 = sshll.u32 [#allocation5], 4
          %s107 = int_to_ptr.vmem [resolvable:$true] %s106
          %109 = dma.vmem_to_hbm [thread:$0]  %s107, 128, %s1, [#allocation4]
        $region32: #{tpu_custom_call.1} parent=23 // pred_fallthru
          _
        // Predicated region
        $region33: #{tpu_custom_call.1} parent=23 // pred_check
          %p110 = pneg %p48
        $region34: #{tpu_custom_call.1} parent=23 // pred_check_branch
          %112 = sbr.rel (%p110) target = $region36
        $region35: #{tpu_custom_call.1} parent=23 // pred_region
          %113 = dma.done [#allocation4], 128
        $region36: #{tpu_custom_call.1} parent=23 // pred_fallthru
          _
      $region24: #{tpu_custom_call.1} parent=5 // pred_fallthru
        _
      %p114 = scmp.le.s32.totalorder 2, %s9
      // Predicated region
      $region37: #{tpu_custom_call.1} parent=5 // pred_check
        %p115 = pneg %p114
      $region38: #{tpu_custom_call.1} parent=5 // pred_check_branch
        %117 = sbr.rel (%p115) target = $region40
      $region39: #{tpu_custom_call.1} parent=5 // pred_region
        %s118 = ssub.s32 %s9, 2
      $region40: #{tpu_custom_call.1} parent=5 // pred_fallthru
        _
    $region6: #{tpu_custom_call.1} parent=1 // loop_footer
      %s13 = sadd.s32 1, %s9
    $region7: #{tpu_custom_call.1} parent=1 // loop_footer_branch
      %8 = sbr.rel target = $region3
    $region8: #{tpu_custom_call.1} parent=1 // loop_exit
      _
    %119 = vsyncpa [#allocation3], 1
    %s120 = scalar_lea.sflag [#allocation3], 1
    %121 = vsyncpa %s120, 1
    %122 = vsyncpa [#allocation4], 1
    %s123 = scalar_lea.sflag [#allocation4], 1
    %124 = vsyncpa %s123, 1

// kernel: forward.2
$region0: #{forward.2}
  #allocation0 [shape = 'u32[]', space=smem, size = 0x4, offset = 0x4, fixed_abs, tag = 'smem constant byte address 0x4 - core index']
  #allocation1 [shape = 'u32[144,128]{1,0:T(1,128)}', space=vmem, size = 0x12000, scoped, tag = 'internal scratch']
  #allocation2 [shape = 'f32[1,1]{1,0:T(1,128)S(6)}', space=smem, size = 0x200, scoped, tag = 'scoped memory for forward.2']
  %s0 = inlined_call_operand.<no memory space> [shape: f32[1,1], index: 0, kind: input, shape index: {}]
  %s1 = inlined_call_operand.vmem [shape: bf16[128,128], index: 1, kind: input, shape index: {}]
  %s2 = inlined_call_operand.vmem [shape: bf16[128,128], index: 2, kind: input, shape index: {}]
  %s3 = inlined_call_operand.vmem [shape: bf16[128,128], index: 3, kind: output, shape index: {}]
  %s4 = sld [smem:[#allocation0]]
  $region22: #{forward.2} parent=0
    _
  %s6 = ssub.s32 1, %s4
  %s7 = scalar_select 0, %s6, %s4
  %8 = sst [smem:[#allocation2]] %s0
  // Predicated region
  $region2: #{forward.2} parent=0 // pred_check
    _
  $region3: #{forward.2} parent=0 // pred_check_branch
    %10 = sbr.rel (0) target = $region5
  $region4: #{forward.2} parent=0 // pred_region
    _
  $region5: #{forward.2} parent=0 // pred_fallthru
    _
  // Predicated region
  $region6: #{forward.2} parent=0 // pred_check
    _
  $region7: #{forward.2} parent=0 // pred_check_branch
    %12 = sbr.rel (0) target = $region9
  $region8: #{forward.2} parent=0 // pred_region
    _
  $region9: #{forward.2} parent=0 // pred_fallthru
    _
  // Predicated region
  $region10: #{forward.2} parent=0 // pred_check
    _
  $region11: #{forward.2} parent=0 // pred_check_branch
    %14 = sbr.rel (0) target = $region13
  $region12: #{forward.2} parent=0 // pred_region
    _
  $region13: #{forward.2} parent=0 // pred_fallthru
    _
  %v16 = vld [vmem:[%s2] sm:$0xf]
  %v17 = vld [vmem:[%s2 + $0x4] sm:$0xf]
  %v18 = vld [vmem:[%s2 + $0x8] sm:$0xf]
  %v19 = vld [vmem:[%s2 + $0xc] sm:$0xf]
  %v20 = vld [vmem:[%s2 + $0x10] sm:$0xf]
  %v21 = vld [vmem:[%s2 + $0x14] sm:$0xf]
  %v22 = vld [vmem:[%s2 + $0x18] sm:$0xf]
  %v23 = vld [vmem:[%s2 + $0x1c] sm:$0xf]
  %v24 = vld [vmem:[%s2 + $0x20] sm:$0xf]
  %v25 = vld [vmem:[%s2 + $0x24] sm:$0xf]
  %v26 = vld [vmem:[%s2 + $0x28] sm:$0xf]
  %v27 = vld [vmem:[%s2 + $0x2c] sm:$0xf]
  %v28 = vld [vmem:[%s2 + $0x30] sm:$0xf]
  %v29 = vld [vmem:[%s2 + $0x34] sm:$0xf]
  %v30 = vld [vmem:[%s2 + $0x38] sm:$0xf]
  %v31 = vld [vmem:[%s2 + $0x3c] sm:$0xf]
  %v32 = vld [vmem:[%s1] sm:$0xf]
  %v33 = vld [vmem:[%s1 + $0x4] sm:$0xf]
  %v34 = vld [vmem:[%s1 + $0x8] sm:$0xf]
  %v35 = vld [vmem:[%s1 + $0xc] sm:$0xf]
  %v36 = vld [vmem:[%s1 + $0x10] sm:$0xf]
  %v37 = vld [vmem:[%s1 + $0x14] sm:$0xf]
  %v38 = vld [vmem:[%s1 + $0x18] sm:$0xf]
  %v39 = vld [vmem:[%s1 + $0x1c] sm:$0xf]
  %v40 = vld [vmem:[%s1 + $0x20] sm:$0xf]
  %v41 = vld [vmem:[%s1 + $0x24] sm:$0xf]
  %v42 = vld [vmem:[%s1 + $0x28] sm:$0xf]
  %v43 = vld [vmem:[%s1 + $0x2c] sm:$0xf]
  %v44 = vld [vmem:[%s1 + $0x30] sm:$0xf]
  %v45 = vld [vmem:[%s1 + $0x34] sm:$0xf]
  %v46 = vld [vmem:[%s1 + $0x38] sm:$0xf]
  %v47 = vld [vmem:[%s1 + $0x3c] sm:$0xf]
  %v64 = vunpack.c.l.b16 %v16
  %v65 = vunpack.c.l.b16 %v17
  %v66 = vunpack.c.l.b16 %v18
  %v67 = vunpack.c.l.b16 %v19
  %v68 = vunpack.c.l.b16 %v20
  %v69 = vunpack.c.l.b16 %v21
  %v70 = vunpack.c.l.b16 %v22
  %v71 = vunpack.c.l.b16 %v23
  %v72 = vunpack.c.l.b16 %v24
  %v73 = vunpack.c.l.b16 %v25
  %v74 = vunpack.c.l.b16 %v26
  %v75 = vunpack.c.l.b16 %v27
  %v76 = vunpack.c.l.b16 %v28
  %v77 = vunpack.c.l.b16 %v29
  %v78 = vunpack.c.l.b16 %v30
  %v79 = vunpack.c.l.b16 %v31
  %v80 = vpack.c.b16 %v65, %v64
  %v81 = vpack.c.b16 %v67, %v66
  %v82 = vpack.c.b16 %v69, %v68
  %v83 = vpack.c.b16 %v71, %v70
  %v84 = vpack.c.b16 %v73, %v72
  %v85 = vpack.c.b16 %v75, %v74
  %v86 = vpack.c.b16 %v77, %v76
  %v87 = vpack.c.b16 %v79, %v78
  %v112 = vunpack.c.l.b16 %v32
  %v113 = vunpack.c.l.b16 %v33
  %v114 = vunpack.c.l.b16 %v34
  %v115 = vunpack.c.l.b16 %v35
  %v116 = vunpack.c.l.b16 %v36
  %v117 = vunpack.c.l.b16 %v37
  %v118 = vunpack.c.l.b16 %v38
  %v119 = vunpack.c.l.b16 %v39
  %v120 = vunpack.c.l.b16 %v40
  %v121 = vunpack.c.l.b16 %v41
  %v122 = vunpack.c.l.b16 %v42
  %v123 = vunpack.c.l.b16 %v43
  %v124 = vunpack.c.l.b16 %v44
  %v125 = vunpack.c.l.b16 %v45
  %v126 = vunpack.c.l.b16 %v46
  %v127 = vunpack.c.l.b16 %v47
  %v128 = vpack.c.b16 %v113, %v112
  %v129 = vpack.c.b16 %v115, %v114
  %v130 = vpack.c.b16 %v117, %v116
  %v131 = vpack.c.b16 %v119, %v118
  %v132 = vpack.c.b16 %v121, %v120
  %v133 = vpack.c.b16 %v123, %v122
  %v134 = vpack.c.b16 %v125, %v124
  %v135 = vpack.c.b16 %v127, %v126
  %144 = vmatprep.subr.bf16.mxu0 0
  %145 = vmatpush1.bf16.msra.mxu0 %v135
  %146 = vmatprep.subr.bf16.mxu0 0
  %147 = vmatpush1.bf16.msra.mxu0 %v134
  %148 = vmatprep.subr.bf16.mxu0 0
  %149 = vmatpush1.bf16.msra.mxu0 %v133
  %150 = vmatprep.subr.bf16.mxu0 0
  %151 = vmatpush1.bf16.msra.mxu0 %v132
  %152 = vmatprep.subr.bf16.mxu0 0
  %153 = vmatpush1.bf16.msra.mxu0 %v131
  %154 = vmatprep.subr.bf16.mxu0 0
  %155 = vmatpush1.bf16.msra.mxu0 %v130
  %156 = vmatprep.subr.bf16.mxu0 0
  %157 = vmatpush1.bf16.msra.mxu0 %v129
  %158 = vmatprep.subr.bf16.mxu0 0
  %159 = vmatpush1.bf16.msra.mxu0 %v128
  %160 = vmatprep.subr.bf16.mxu0 0
  %161 = vmatpush2.bf16.msra.mxu0 0
  %162 = vmatprep.subr.bf16.mxu0 0
  %163 = vmatpush2.bf16.msra.mxu0 0
  %164 = vmatprep.subr.bf16.mxu0 0
  %165 = vmatpush2.bf16.msra.mxu0 0
  %166 = vmatprep.subr.bf16.mxu0 0
  %167 = vmatpush2.bf16.msra.mxu0 0
  %168 = vmatprep.subr.bf16.mxu0 0
  %169 = vmatpush2.bf16.msra.mxu0 0
  %170 = vmatprep.subr.bf16.mxu0 0
  %171 = vmatpush2.bf16.msra.mxu0 0
  %172 = vmatprep.subr.bf16.mxu0 0
  %173 = vmatpush2.bf16.msra.mxu0 0
  %174 = vmatprep.subr.bf16.mxu0 0
  %175 = vmatpush2.bf16.msra.mxu0 0
  %176 = vmatprep.mubr.bf16.mxu0 0
  %177 = vmatmul.mubr.bf16.gmra.mxu0 %v80
  %v178 = vpop.f32.mrf.mxu0
  %v179 = vadd.f32 0.0, %v178
  %v180 = vpop.f32.mrf.mxu0
  %v181 = vpop.f32.mrf.mxu0
  %v182 = vadd.f32 0.0, %v181
  %v183 = vpop.f32.mrf.mxu0
  %184 = vmatprep.mubr.bf16.mxu0 0
  %185 = vmatmul.mubr.bf16.gmra.mxu0 %v81
  %v186 = vpop.f32.mrf.mxu0
  %v187 = vadd.f32 0.0, %v186
  %v188 = vpop.f32.mrf.mxu0
  %v189 = vpop.f32.mrf.mxu0
  %v190 = vadd.f32 0.0, %v189
  %v191 = vpop.f32.mrf.mxu0
  %192 = vmatprep.mubr.bf16.mxu0 0
  %193 = vmatmul.mubr.bf16.gmra.mxu0 %v82
  %v194 = vpop.f32.mrf.mxu0
  %v195 = vadd.f32 0.0, %v194
  %v196 = vpop.f32.mrf.mxu0
  %v197 = vpop.f32.mrf.mxu0
  %v198 = vadd.f32 0.0, %v197
  %v199 = vpop.f32.mrf.mxu0
  %200 = vmatprep.mubr.bf16.mxu0 0
  %201 = vmatmul.mubr.bf16.gmra.mxu0 %v83
  %v202 = vpop.f32.mrf.mxu0
  %v203 = vadd.f32 0.0, %v202
  %v204 = vpop.f32.mrf.mxu0
  %v205 = vpop.f32.mrf.mxu0
  %v206 = vadd.f32 0.0, %v205
  %v207 = vpop.f32.mrf.mxu0
  %208 = vmatprep.mubr.bf16.mxu0 0
  %209 = vmatmul.mubr.bf16.gmra.mxu0 %v84
  %v210 = vpop.f32.mrf.mxu0
  %v211 = vadd.f32 0.0, %v210
  %v212 = vpop.f32.mrf.mxu0
  %v213 = vpop.f32.mrf.mxu0
  %v214 = vadd.f32 0.0, %v213
  %v215 = vpop.f32.mrf.mxu0
  %216 = vmatprep.mubr.bf16.mxu0 0
  %217 = vmatmul.mubr.bf16.gmra.mxu0 %v85
  %v218 = vpop.f32.mrf.mxu0
  %v219 = vadd.f32 0.0, %v218
  %v220 = vpop.f32.mrf.mxu0
  %v221 = vpop.f32.mrf.mxu0
  %v222 = vadd.f32 0.0, %v221
  %v223 = vpop.f32.mrf.mxu0
  %224 = vmatprep.mubr.bf16.mxu0 0
  %225 = vmatmul.mubr.bf16.gmra.mxu0 %v86
  %v226 = vpop.f32.mrf.mxu0
  %v227 = vadd.f32 0.0, %v226
  %v228 = vpop.f32.mrf.mxu0
  %v229 = vpop.f32.mrf.mxu0
  %v230 = vadd.f32 0.0, %v229
  %v231 = vpop.f32.mrf.mxu0
  %232 = vmatprep.mubr.bf16.mxu0 0
  %233 = vmatmul.mubr.bf16.gmra.mxu0 %v87
  %v234 = vpop.f32.mrf.mxu0
  %v235 = vadd.f32 0.0, %v234
  %v236 = vpop.f32.mrf.mxu0
  %v237 = vpop.f32.mrf.mxu0
  %v238 = vadd.f32 0.0, %v237
  %v239 = vpop.f32.mrf.mxu0
  %240 = vdwg.mxu0
  %v241 = vmul.f32 %v179, %v179
  %v242 = vmul.f32 %v182, %v182
  %v243 = vmul.f32 %v187, %v187
  %v244 = vmul.f32 %v190, %v190
  %v245 = vmul.f32 %v195, %v195
  %v246 = vmul.f32 %v198, %v198
  %v247 = vmul.f32 %v203, %v203
  %v248 = vmul.f32 %v206, %v206
  %v249 = vmul.f32 %v211, %v211
  %v250 = vmul.f32 %v214, %v214
  %v251 = vmul.f32 %v219, %v219
  %v252 = vmul.f32 %v222, %v222
  %v253 = vmul.f32 %v227, %v227
  %v254 = vmul.f32 %v230, %v230
  %v255 = vmul.f32 %v235, %v235
  %v256 = vmul.f32 %v238, %v238
  %v257 = vadd.f32 %v241, %v242
  %v258 = vadd.f32 %v257, %v243
  %v259 = vadd.f32 %v258, %v244
  %v260 = vadd.f32 %v259, %v245
  %v261 = vadd.f32 %v260, %v246
  %v262 = vadd.f32 %v261, %v247
  %v263 = vadd.f32 %v262, %v248
  %v264 = vadd.f32 %v263, %v249
  %v265 = vadd.f32 %v264, %v250
  %v266 = vadd.f32 %v265, %v251
  %v267 = vadd.f32 %v266, %v252
  %v268 = vadd.f32 %v267, %v253
  %v269 = vadd.f32 %v268, %v254
  %v270 = vadd.f32 %v269, %v255
  %v271 = vadd.f32 %v270, %v256
  %v272 = vrot.slane %v271, 4
  %v273 = vadd.f32 %v271, %v272
  %v274 = vrot.slane %v273, 2
  %v275 = vadd.f32 %v273, %v274
  %v276 = vrot.slane %v275, 1
  %v277 = vadd.f32 %v275, %v276
  %v278 = vadd.f32 %v277, 1e-12
  %v279 = vrsqrt.pop %v278
  %s280 = sld [smem:[#allocation2]]
  %v281 = vstv %s280
  %v282 = vmul.f32 %v279, %v281
  %v283 = vmul.f32 %v179, %v282
  %v284 = vmul.f32 %v182, %v282
  %v285 = vmul.f32 %v187, %v282
  %v286 = vmul.f32 %v190, %v282
  %v287 = vmul.f32 %v195, %v282
  %v288 = vmul.f32 %v198, %v282
  %v289 = vmul.f32 %v203, %v282
  %v290 = vmul.f32 %v206, %v282
  %v291 = vmul.f32 %v211, %v282
  %v292 = vmul.f32 %v214, %v282
  %v293 = vmul.f32 %v219, %v282
  %v294 = vmul.f32 %v222, %v282
  %v295 = vmul.f32 %v227, %v282
  %v296 = vmul.f32 %v230, %v282
  %v297 = vmul.f32 %v235, %v282
  %v298 = vmul.f32 %v238, %v282
  %v299 = vpack.c.bf16 %v284, %v283
  %v300 = vpack.c.bf16 %v286, %v285
  %v301 = vpack.c.bf16 %v288, %v287
  %v302 = vpack.c.bf16 %v290, %v289
  %v303 = vpack.c.bf16 %v292, %v291
  %v304 = vpack.c.bf16 %v294, %v293
  %v305 = vpack.c.bf16 %v296, %v295
  %v306 = vpack.c.bf16 %v298, %v297
  %v315 = vunpack.c.l.b16 %v299
  %v316 = vunpack.c.h.b16 %v299
  %v317 = vunpack.c.l.b16 %v300
  %v318 = vunpack.c.h.b16 %v300
  %v319 = vunpack.c.l.b16 %v301
  %v320 = vunpack.c.h.b16 %v301
  %v321 = vunpack.c.l.b16 %v302
  %v322 = vunpack.c.h.b16 %v302
  %v323 = vunpack.c.l.b16 %v303
  %v324 = vunpack.c.h.b16 %v303
  %v325 = vunpack.c.l.b16 %v304
  %v326 = vunpack.c.h.b16 %v304
  %v327 = vunpack.c.l.b16 %v305
  %v328 = vunpack.c.h.b16 %v305
  %v329 = vunpack.c.l.b16 %v306
  %v330 = vunpack.c.h.b16 %v306
  %v331 = vpack.c.b16 %v315, %v315
  %v332 = vpack.c.b16 %v316, %v316
  %v333 = vpack.c.b16 %v317, %v317
  %v334 = vpack.c.b16 %v318, %v318
  %v335 = vpack.c.b16 %v319, %v319
  %v336 = vpack.c.b16 %v320, %v320
  %v337 = vpack.c.b16 %v321, %v321
  %v338 = vpack.c.b16 %v322, %v322
  %v339 = vpack.c.b16 %v323, %v323
  %v340 = vpack.c.b16 %v324, %v324
  %v341 = vpack.c.b16 %v325, %v325
  %v342 = vpack.c.b16 %v326, %v326
  %v343 = vpack.c.b16 %v327, %v327
  %v344 = vpack.c.b16 %v328, %v328
  %v345 = vpack.c.b16 %v329, %v329
  %v346 = vpack.c.b16 %v330, %v330
  %363 = vst [vmem:[%s3] sm:$0xf] %v331
  %364 = vst [vmem:[%s3 + $0x4] sm:$0xf] %v332
  %365 = vst [vmem:[%s3 + $0x8] sm:$0xf] %v333
  %366 = vst [vmem:[%s3 + $0xc] sm:$0xf] %v334
  %367 = vst [vmem:[%s3 + $0x10] sm:$0xf] %v335
  %368 = vst [vmem:[%s3 + $0x14] sm:$0xf] %v336
  %369 = vst [vmem:[%s3 + $0x18] sm:$0xf] %v337
  %370 = vst [vmem:[%s3 + $0x1c] sm:$0xf] %v338
  %371 = vst [vmem:[%s3 + $0x20] sm:$0xf] %v339
  %372 = vst [vmem:[%s3 + $0x24] sm:$0xf] %v340
  %373 = vst [vmem:[%s3 + $0x28] sm:$0xf] %v341
  %374 = vst [vmem:[%s3 + $0x2c] sm:$0xf] %v342
  %375 = vst [vmem:[%s3 + $0x30] sm:$0xf] %v343
  %376 = vst [vmem:[%s3 + $0x34] sm:$0xf] %v344
  %377 = vst [vmem:[%s3 + $0x38] sm:$0xf] %v345
  %378 = vst [vmem:[%s3 + $0x3c] sm:$0xf] %v346
  // Predicated region
  $region14: #{forward.2} parent=0 // pred_check
    _
  $region15: #{forward.2} parent=0 // pred_check_branch
    %380 = sbr.rel (0) target = $region17
  $region16: #{forward.2} parent=0 // pred_region
    _
  $region17: #{forward.2} parent=0 // pred_fallthru
    _
  // Predicated region
  $region18: #{forward.2} parent=0 // pred_check
    _
  $region19: #{forward.2} parent=0 // pred_check_branch
    %382 = sbr.rel (0) target = $region21
  $region20: #{forward.2} parent=0 // pred_region
    _
  $region21: #{forward.2} parent=0 // pred_fallthru
    _

// kernel: forward.3
$region0: #{forward.3}
  #allocation0 [shape = 'u32[]', space=smem, size = 0x4, offset = 0x4, fixed_abs, tag = 'smem constant byte address 0x4 - core index']
  #allocation1 [shape = 'u32[144,128]{1,0:T(1,128)}', space=vmem, size = 0x12000, scoped, tag = 'internal scratch']
  #allocation2 [shape = 'bf16[16,128]{1,0:T(8,128)(2,1)}', space=vmem, size = 0x1000, scoped, tag = 'scratch operand']
  %s0 = inlined_call_operand.vmem [shape: bf16[16,768], index: 0, kind: input, shape index: {}]
  %s1 = inlined_call_operand.vmem [shape: bf16[768,128], index: 1, kind: input, shape index: {}]
  %s2 = inlined_call_operand.vmem [shape: bf16[128,128], index: 2, kind: input, shape index: {}]
  %s3 = inlined_call_operand.vmem [shape: f32[1,128], index: 3, kind: input, shape index: {}]
  %s4 = inlined_call_operand.vmem [shape: f32[16,128], index: 4, kind: output, shape index: {0}]
  %s5 = inlined_call_operand.hbm [shape: f32[16,1], index: 5, kind: output, shape index: {1}]
  %6 = xla_tuple %s4, %s5
  %s7 = sld [smem:[#allocation0]]
  $region38: #{forward.3} parent=0
    _
  %s9 = ssub.s32 1, %s7
  %s10 = scalar_select 0, %s9, %s7
  $region1: #{forward.3} parent=0
    #allocation3 [shape = 'u8[8192]{0}', space=vmem, size = 0x2000, scoped, tag = 'output window, operand 1, single buffered']
    #allocation4 [shape = 's32[1]{0}', space=sflag, size = 0x4, scoped, tag = 'scoped memory for forward.3']
    %11 = vsyncpa [#allocation4], 0
    // Predicated region
    $region2: #{forward.3} parent=1 // pred_check
      _
    $region3: #{forward.3} parent=1 // pred_check_branch
      %13 = sbr.rel (0) target = $region5
    $region4: #{forward.3} parent=1 // pred_region
      _
    $region5: #{forward.3} parent=1 // pred_fallthru
      _
    // Predicated region
    $region6: #{forward.3} parent=1 // pred_check
      _
    $region7: #{forward.3} parent=1 // pred_check_branch
      %15 = sbr.rel (0) target = $region9
    $region8: #{forward.3} parent=1 // pred_region
      _
    $region9: #{forward.3} parent=1 // pred_fallthru
      _
    // Predicated region
    $region10: #{forward.3} parent=1 // pred_check
      _
    $region11: #{forward.3} parent=1 // pred_check_branch
      %17 = sbr.rel (0) target = $region13
    $region12: #{forward.3} parent=1 // pred_region
      _
    $region13: #{forward.3} parent=1 // pred_fallthru
      _
    // Predicated region
    $region14: #{forward.3} parent=1 // pred_check
      _
    $region15: #{forward.3} parent=1 // pred_check_branch
      %19 = sbr.rel (0) target = $region17
    $region16: #{forward.3} parent=1 // pred_region
      _
    $region17: #{forward.3} parent=1 // pred_fallthru
      _
    %p21 = scmp.eq.s32.totalorder 0, 0
    // Predicated region
    $region18: #{forward.3} parent=1 // pred_check
      %p22 = pneg %p21
    $region19: #{forward.3} parent=1 // pred_check_branch
      %24 = sbr.rel (%p22) target = $region21
    $region20: #{forward.3} parent=1 // pred_region
      %v25 = vld [vmem:[%s0] sm:$0xff]
      %v26 = vld [vmem:[%s0 + $0x8] sm:$0xff]
      %v27 = vld [vmem:[%s0 + $0x10] sm:$0xff]
      %v28 = vld [vmem:[%s0 + $0x18] sm:$0xff]
      %v29 = vld [vmem:[%s0 + $0x20] sm:$0xff]
      %v30 = vld [vmem:[%s0 + $0x28] sm:$0xff]
      %v31 = vld [vmem:[%s1] sm:$0xf]
      %v32 = vld [vmem:[%s1 + $0x4] sm:$0xf]
      %v33 = vld [vmem:[%s1 + $0x8] sm:$0xf]
      %v34 = vld [vmem:[%s1 + $0xc] sm:$0xf]
      %v35 = vld [vmem:[%s1 + $0x10] sm:$0xf]
      %v36 = vld [vmem:[%s1 + $0x14] sm:$0xf]
      %v37 = vld [vmem:[%s1 + $0x18] sm:$0xf]
      %v38 = vld [vmem:[%s1 + $0x1c] sm:$0xf]
      %v39 = vld [vmem:[%s1 + $0x20] sm:$0xf]
      %v40 = vld [vmem:[%s1 + $0x24] sm:$0xf]
      %v41 = vld [vmem:[%s1 + $0x28] sm:$0xf]
      %v42 = vld [vmem:[%s1 + $0x2c] sm:$0xf]
      %v43 = vld [vmem:[%s1 + $0x30] sm:$0xf]
      %v44 = vld [vmem:[%s1 + $0x34] sm:$0xf]
      %v45 = vld [vmem:[%s1 + $0x38] sm:$0xf]
      %v46 = vld [vmem:[%s1 + $0x3c] sm:$0xf]
      %v47 = vld [vmem:[%s1 + $0x40] sm:$0xf]
      %v48 = vld [vmem:[%s1 + $0x44] sm:$0xf]
      %v49 = vld [vmem:[%s1 + $0x48] sm:$0xf]
      %v50 = vld [vmem:[%s1 + $0x4c] sm:$0xf]
      %v51 = vld [vmem:[%s1 + $0x50] sm:$0xf]
      %v52 = vld [vmem:[%s1 + $0x54] sm:$0xf]
      %v53 = vld [vmem:[%s1 + $0x58] sm:$0xf]
      %v54 = vld [vmem:[%s1 + $0x5c] sm:$0xf]
      %v55 = vld [vmem:[%s1 + $0x60] sm:$0xf]
      %v56 = vld [vmem:[%s1 + $0x64] sm:$0xf]
      %v57 = vld [vmem:[%s1 + $0x68] sm:$0xf]
      %v58 = vld [vmem:[%s1 + $0x6c] sm:$0xf]
      %v59 = vld [vmem:[%s1 + $0x70] sm:$0xf]
      %v60 = vld [vmem:[%s1 + $0x74] sm:$0xf]
      %v61 = vld [vmem:[%s1 + $0x78] sm:$0xf]
      %v62 = vld [vmem:[%s1 + $0x7c] sm:$0xf]
      %v63 = vld [vmem:[%s1 + $0x80] sm:$0xf]
      %v64 = vld [vmem:[%s1 + $0x84] sm:$0xf]
      %v65 = vld [vmem:[%s1 + $0x88] sm:$0xf]
      %v66 = vld [vmem:[%s1 + $0x8c] sm:$0xf]
      %v67 = vld [vmem:[%s1 + $0x90] sm:$0xf]
      %v68 = vld [vmem:[%s1 + $0x94] sm:$0xf]
      %v69 = vld [vmem:[%s1 + $0x98] sm:$0xf]
      %v70 = vld [vmem:[%s1 + $0x9c] sm:$0xf]
      %v71 = vld [vmem:[%s1 + $0xa0] sm:$0xf]
      %v72 = vld [vmem:[%s1 + $0xa4] sm:$0xf]
      %v73 = vld [vmem:[%s1 + $0xa8] sm:$0xf]
      %v74 = vld [vmem:[%s1 + $0xac] sm:$0xf]
      %v75 = vld [vmem:[%s1 + $0xb0] sm:$0xf]
      %v76 = vld [vmem:[%s1 + $0xb4] sm:$0xf]
      %v77 = vld [vmem:[%s1 + $0xb8] sm:$0xf]
      %v78 = vld [vmem:[%s1 + $0xbc] sm:$0xf]
      %v79 = vld [vmem:[%s1 + $0xc0] sm:$0xf]
      %v80 = vld [vmem:[%s1 + $0xc4] sm:$0xf]
      %v81 = vld [vmem:[%s1 + $0xc8] sm:$0xf]
      %v82 = vld [vmem:[%s1 + $0xcc] sm:$0xf]
      %v83 = vld [vmem:[%s1 + $0xd0] sm:$0xf]
      %v84 = vld [vmem:[%s1 + $0xd4] sm:$0xf]
      %v85 = vld [vmem:[%s1 + $0xd8] sm:$0xf]
      %v86 = vld [vmem:[%s1 + $0xdc] sm:$0xf]
      %v87 = vld [vmem:[%s1 + $0xe0] sm:$0xf]
      %v88 = vld [vmem:[%s1 + $0xe4] sm:$0xf]
      %v89 = vld [vmem:[%s1 + $0xe8] sm:$0xf]
      %v90 = vld [vmem:[%s1 + $0xec] sm:$0xf]
      %v91 = vld [vmem:[%s1 + $0xf0] sm:$0xf]
      %v92 = vld [vmem:[%s1 + $0xf4] sm:$0xf]
      %v93 = vld [vmem:[%s1 + $0xf8] sm:$0xf]
      %v94 = vld [vmem:[%s1 + $0xfc] sm:$0xf]
      %v95 = vld [vmem:[%s1 + $0x100] sm:$0xf]
      %v96 = vld [vmem:[%s1 + $0x104] sm:$0xf]
      %v97 = vld [vmem:[%s1 + $0x108] sm:$0xf]
      %v98 = vld [vmem:[%s1 + $0x10c] sm:$0xf]
      %v99 = vld [vmem:[%s1 + $0x110] sm:$0xf]
      %v100 = vld [vmem:[%s1 + $0x114] sm:$0xf]
      %v101 = vld [vmem:[%s1 + $0x118] sm:$0xf]
      %v102 = vld [vmem:[%s1 + $0x11c] sm:$0xf]
      %v103 = vld [vmem:[%s1 + $0x120] sm:$0xf]
      %v104 = vld [vmem:[%s1 + $0x124] sm:$0xf]
      %v105 = vld [vmem:[%s1 + $0x128] sm:$0xf]
      %v106 = vld [vmem:[%s1 + $0x12c] sm:$0xf]
      %v107 = vld [vmem:[%s1 + $0x130] sm:$0xf]
      %v108 = vld [vmem:[%s1 + $0x134] sm:$0xf]
      %v109 = vld [vmem:[%s1 + $0x138] sm:$0xf]
      %v110 = vld [vmem:[%s1 + $0x13c] sm:$0xf]
      %v111 = vld [vmem:[%s1 + $0x140] sm:$0xf]
      %v112 = vld [vmem:[%s1 + $0x144] sm:$0xf]
      %v113 = vld [vmem:[%s1 + $0x148] sm:$0xf]
      %v114 = vld [vmem:[%s1 + $0x14c] sm:$0xf]
      %v115 = vld [vmem:[%s1 + $0x150] sm:$0xf]
      %v116 = vld [vmem:[%s1 + $0x154] sm:$0xf]
      %v117 = vld [vmem:[%s1 + $0x158] sm:$0xf]
      %v118 = vld [vmem:[%s1 + $0x15c] sm:$0xf]
      %v119 = vld [vmem:[%s1 + $0x160] sm:$0xf]
      %v120 = vld [vmem:[%s1 + $0x164] sm:$0xf]
      %v121 = vld [vmem:[%s1 + $0x168] sm:$0xf]
      %v122 = vld [vmem:[%s1 + $0x16c] sm:$0xf]
      %v123 = vld [vmem:[%s1 + $0x170] sm:$0xf]
      %v124 = vld [vmem:[%s1 + $0x174] sm:$0xf]
      %v125 = vld [vmem:[%s1 + $0x178] sm:$0xf]
      %v126 = vld [vmem:[%s1 + $0x17c] sm:$0xf]
      %v133 = vunpack.c.l.b16 %v25
      %v134 = vunpack.c.h.b16 %v25
      %v135 = vunpack.c.l.b16 %v26
      %v136 = vunpack.c.h.b16 %v26
      %v137 = vunpack.c.l.b16 %v27
      %v138 = vunpack.c.h.b16 %v27
      %v139 = vunpack.c.l.b16 %v28
      %v140 = vunpack.c.h.b16 %v28
      %v141 = vunpack.c.l.b16 %v29
      %v142 = vunpack.c.h.b16 %v29
      %v143 = vunpack.c.l.b16 %v30
      %v144 = vunpack.c.h.b16 %v30
      %v145 = vpack.c.b16 %v139, %v133
      %v146 = vpack.c.b16 %v140, %v134
      %v147 = vpack.c.b16 %v141, %v135
      %v148 = vpack.c.b16 %v142, %v136
      %v149 = vpack.c.b16 %v143, %v137
      %v150 = vpack.c.b16 %v144, %v138
      %v253 = vunpack.c.l.b16 %v31
      %v254 = vunpack.c.l.b16 %v32
      %v255 = vunpack.c.l.b16 %v33
      %v256 = vunpack.c.l.b16 %v34
      %v257 = vunpack.c.l.b16 %v35
      %v258 = vunpack.c.l.b16 %v36
      %v259 = vunpack.c.l.b16 %v37
      %v260 = vunpack.c.l.b16 %v38
      %v261 = vunpack.c.l.b16 %v39
      %v262 = vunpack.c.l.b16 %v40
      %v263 = vunpack.c.l.b16 %v41
      %v264 = vunpack.c.l.b16 %v42
      %v265 = vunpack.c.l.b16 %v43
      %v266 = vunpack.c.l.b16 %v44
      %v267 = vunpack.c.l.b16 %v45
      %v268 = vunpack.c.l.b16 %v46
      %v269 = vunpack.c.l.b16 %v47
      %v270 = vunpack.c.l.b16 %v48
      %v271 = vunpack.c.l.b16 %v49
      %v272 = vunpack.c.l.b16 %v50
      %v273 = vunpack.c.l.b16 %v51
      %v274 = vunpack.c.l.b16 %v52
      %v275 = vunpack.c.l.b16 %v53
      %v276 = vunpack.c.l.b16 %v54
      %v277 = vunpack.c.l.b16 %v55
      %v278 = vunpack.c.l.b16 %v56
      %v279 = vunpack.c.l.b16 %v57
      %v280 = vunpack.c.l.b16 %v58
      %v281 = vunpack.c.l.b16 %v59
      %v282 = vunpack.c.l.b16 %v60
      %v283 = vunpack.c.l.b16 %v61
      %v284 = vunpack.c.l.b16 %v62
      %v285 = vunpack.c.l.b16 %v63
      %v286 = vunpack.c.l.b16 %v64
      %v287 = vunpack.c.l.b16 %v65
      %v288 = vunpack.c.l.b16 %v66
      %v289 = vunpack.c.l.b16 %v67
      %v290 = vunpack.c.l.b16 %v68
      %v291 = vunpack.c.l.b16 %v69
      %v292 = vunpack.c.l.b16 %v70
      %v293 = vunpack.c.l.b16 %v71
      %v294 = vunpack.c.l.b16 %v72
      %v295 = vunpack.c.l.b16 %v73
      %v296 = vunpack.c.l.b16 %v74
      %v297 = vunpack.c.l.b16 %v75
      %v298 = vunpack.c.l.b16 %v76
      %v299 = vunpack.c.l.b16 %v77
      %v300 = vunpack.c.l.b16 %v78
      %v301 = vunpack.c.l.b16 %v79
      %v302 = vunpack.c.l.b16 %v80
      %v303 = vunpack.c.l.b16 %v81
      %v304 = vunpack.c.l.b16 %v82
      %v305 = vunpack.c.l.b16 %v83
      %v306 = vunpack.c.l.b16 %v84
      %v307 = vunpack.c.l.b16 %v85
      %v308 = vunpack.c.l.b16 %v86
      %v309 = vunpack.c.l.b16 %v87
      %v310 = vunpack.c.l.b16 %v88
      %v311 = vunpack.c.l.b16 %v89
      %v312 = vunpack.c.l.b16 %v90
      %v313 = vunpack.c.l.b16 %v91
      %v314 = vunpack.c.l.b16 %v92
      %v315 = vunpack.c.l.b16 %v93
      %v316 = vunpack.c.l.b16 %v94
      %v317 = vunpack.c.l.b16 %v95
      %v318 = vunpack.c.l.b16 %v96
      %v319 = vunpack.c.l.b16 %v97
      %v320 = vunpack.c.l.b16 %v98
      %v321 = vunpack.c.l.b16 %v99
      %v322 = vunpack.c.l.b16 %v100
      %v323 = vunpack.c.l.b16 %v101
      %v324 = vunpack.c.l.b16 %v102
      %v325 = vunpack.c.l.b16 %v103
      %v326 = vunpack.c.l.b16 %v104
      %v327 = vunpack.c.l.b16 %v105
      %v328 = vunpack.c.l.b16 %v106
      %v329 = vunpack.c.l.b16 %v107
      %v330 = vunpack.c.l.b16 %v108
      %v331 = vunpack.c.l.b16 %v109
      %v332 = vunpack.c.l.b16 %v110
      %v333 = vunpack.c.l.b16 %v111
      %v334 = vunpack.c.l.b16 %v112
      %v335 = vunpack.c.l.b16 %v113
      %v336 = vunpack.c.l.b16 %v114
      %v337 = vunpack.c.l.b16 %v115
      %v338 = vunpack.c.l.b16 %v116
      %v339 = vunpack.c.l.b16 %v117
      %v340 = vunpack.c.l.b16 %v118
      %v341 = vunpack.c.l.b16 %v119
      %v342 = vunpack.c.l.b16 %v120
      %v343 = vunpack.c.l.b16 %v121
      %v344 = vunpack.c.l.b16 %v122
      %v345 = vunpack.c.l.b16 %v123
      %v346 = vunpack.c.l.b16 %v124
      %v347 = vunpack.c.l.b16 %v125
      %v348 = vunpack.c.l.b16 %v126
      %v349 = vpack.c.b16 %v254, %v253
      %v350 = vpack.c.b16 %v256, %v255
      %v351 = vpack.c.b16 %v258, %v257
      %v352 = vpack.c.b16 %v260, %v259
      %v353 = vpack.c.b16 %v262, %v261
      %v354 = vpack.c.b16 %v264, %v263
      %v355 = vpack.c.b16 %v266, %v265
      %v356 = vpack.c.b16 %v268, %v267
      %v357 = vpack.c.b16 %v270, %v269
      %v358 = vpack.c.b16 %v272, %v271
      %v359 = vpack.c.b16 %v274, %v273
      %v360 = vpack.c.b16 %v276, %v275
      %v361 = vpack.c.b16 %v278, %v277
      %v362 = vpack.c.b16 %v280, %v279
      %v363 = vpack.c.b16 %v282, %v281
      %v364 = vpack.c.b16 %v284, %v283
      %v365 = vpack.c.b16 %v286, %v285
      %v366 = vpack.c.b16 %v288, %v287
      %v367 = vpack.c.b16 %v290, %v289
      %v368 = vpack.c.b16 %v292, %v291
      %v369 = vpack.c.b16 %v294, %v293
      %v370 = vpack.c.b16 %v296, %v295
      %v371 = vpack.c.b16 %v298, %v297
      %v372 = vpack.c.b16 %v300, %v299
      %v373 = vpack.c.b16 %v302, %v301
      %v374 = vpack.c.b16 %v304, %v303
      %v375 = vpack.c.b16 %v306, %v305
      %v376 = vpack.c.b16 %v308, %v307
      %v377 = vpack.c.b16 %v310, %v309
      %v378 = vpack.c.b16 %v312, %v311
      %v379 = vpack.c.b16 %v314, %v313
      %v380 = vpack.c.b16 %v316, %v315
      %v381 = vpack.c.b16 %v318, %v317
      %v382 = vpack.c.b16 %v320, %v319
      %v383 = vpack.c.b16 %v322, %v321
      %v384 = vpack.c.b16 %v324, %v323
      %v385 = vpack.c.b16 %v326, %v325
      %v386 = vpack.c.b16 %v328, %v327
      %v387 = vpack.c.b16 %v330, %v329
      %v388 = vpack.c.b16 %v332, %v331
      %v389 = vpack.c.b16 %v334, %v333
      %v390 = vpack.c.b16 %v336, %v335
      %v391 = vpack.c.b16 %v338, %v337
      %v392 = vpack.c.b16 %v340, %v339
      %v393 = vpack.c.b16 %v342, %v341
      %v394 = vpack.c.b16 %v344, %v343
      %v395 = vpack.c.b16 %v346, %v345
      %v396 = vpack.c.b16 %v348, %v347
      %445 = vmatprep.subr.bf16.mxu0 0
      %446 = vmatpush1.bf16.msra.mxu0 %v356
      %447 = vmatprep.subr.bf16.mxu0 0
      %448 = vmatpush1.bf16.msra.mxu0 %v355
      %449 = vmatprep.subr.bf16.mxu0 0
      %450 = vmatpush1.bf16.msra.mxu0 %v354
      %451 = vmatprep.subr.bf16.mxu0 0
      %452 = vmatpush1.bf16.msra.mxu0 %v353
      %453 = vmatprep.subr.bf16.mxu0 0
      %454 = vmatpush1.bf16.msra.mxu0 %v352
      %455 = vmatprep.subr.bf16.mxu0 0
      %456 = vmatpush1.bf16.msra.mxu0 %v351
      %457 = vmatprep.subr.bf16.mxu0 0
      %458 = vmatpush1.bf16.msra.mxu0 %v350
      %459 = vmatprep.subr.bf16.mxu0 0
      %460 = vmatpush1.bf16.msra.mxu0 %v349
      %461 = vmatprep.subr.bf16.mxu0 0
      %462 = vmatpush2.bf16.msra.mxu0 %v364
      %463 = vmatprep.subr.bf16.mxu0 0
      %464 = vmatpush2.bf16.msra.mxu0 %v363
      %465 = vmatprep.subr.bf16.mxu0 0
      %466 = vmatpush2.bf16.msra.mxu0 %v362
      %467 = vmatprep.subr.bf16.mxu0 0
      %468 = vmatpush2.bf16.msra.mxu0 %v361
      %469 = vmatprep.subr.bf16.mxu0 0
      %470 = vmatpush2.bf16.msra.mxu0 %v360
      %471 = vmatprep.subr.bf16.mxu0 0
      %472 = vmatpush2.bf16.msra.mxu0 %v359
      %473 = vmatprep.subr.bf16.mxu0 0
      %474 = vmatpush2.bf16.msra.mxu0 %v358
      %475 = vmatprep.subr.bf16.mxu0 0
      %476 = vmatpush2.bf16.msra.mxu0 %v357
      %477 = vmatprep.mubr.bf16.mxu0 %v146
      %478 = vmatmul.mubr.bf16.gmra.mxu0 %v145
      %v479 = vpop.f32.mrf.mxu0
      %v480 = vadd.f32 0.0, %v479
      %v481 = vpop.f32.mrf.mxu0
      %v482 = vpop.f32.mrf.mxu0
      %v483 = vadd.f32 0.0, %v482
      %v484 = vpop.f32.mrf.mxu0
      %485 = vdwg.mxu0
      %486 = vmatprep.subr.bf16.mxu0 0
      %487 = vmatpush1.bf16.msra.mxu0 %v372
      %488 = vmatprep.subr.bf16.mxu0 0
      %489 = vmatpush1.bf16.msra.mxu0 %v371
      %490 = vmatprep.subr.bf16.mxu0 0
      %491 = vmatpush1.bf16.msra.mxu0 %v370
      %492 = vmatprep.subr.bf16.mxu0 0
      %493 = vmatpush1.bf16.msra.mxu0 %v369
      %494 = vmatprep.subr.bf16.mxu0 0
      %495 = vmatpush1.bf16.msra.mxu0 %v368
      %496 = vmatprep.subr.bf16.mxu0 0
      %497 = vmatpush1.bf16.msra.mxu0 %v367
      %498 = vmatprep.subr.bf16.mxu0 0
      %499 = vmatpush1.bf16.msra.mxu0 %v366
      %500 = vmatprep.subr.bf16.mxu0 0
      %501 = vmatpush1.bf16.msra.mxu0 %v365
      %502 = vmatprep.subr.bf16.mxu0 0
      %503 = vmatpush2.bf16.msra.mxu0 %v380
      %504 = vmatprep.subr.bf16.mxu0 0
      %505 = vmatpush2.bf16.msra.mxu0 %v379
      %506 = vmatprep.subr.bf16.mxu0 0
      %507 = vmatpush2.bf16.msra.mxu0 %v378
      %508 = vmatprep.subr.bf16.mxu0 0
      %509 = vmatpush2.bf16.msra.mxu0 %v377
      %510 = vmatprep.subr.bf16.mxu0 0
      %511 = vmatpush2.bf16.msra.mxu0 %v376
      %512 = vmatprep.subr.bf16.mxu0 0
      %513 = vmatpush2.bf16.msra.mxu0 %v375
      %514 = vmatprep.subr.bf16.mxu0 0
      %515 = vmatpush2.bf16.msra.mxu0 %v374
      %516 = vmatprep.subr.bf16.mxu0 0
      %517 = vmatpush2.bf16.msra.mxu0 %v373
      %518 = vmatprep.mubr.bf16.mxu0 %v148
      %519 = vmatmul.mubr.bf16.gmra.mxu0 %v147
      %v520 = vpop.f32.mrf.mxu0
      %v521 = vadd.f32 %v480, %v520
      %v522 = vpop.f32.mrf.mxu0
      %v523 = vpop.f32.mrf.mxu0
      %v524 = vadd.f32 %v483, %v523
      %v525 = vpop.f32.mrf.mxu0
      %526 = vdwg.mxu0
      %527 = vmatprep.subr.bf16.mxu0 0
      %528 = vmatpush1.bf16.msra.mxu0 %v388
      %529 = vmatprep.subr.bf16.mxu0 0
      %530 = vmatpush1.bf16.msra.mxu0 %v387
      %531 = vmatprep.subr.bf16.mxu0 0
      %532 = vmatpush1.bf16.msra.mxu0 %v386
      %533 = vmatprep.subr.bf16.mxu0 0
      %534 = vmatpush1.bf16.msra.mxu0 %v385
      %535 = vmatprep.subr.bf16.mxu0 0
      %536 = vmatpush1.bf16.msra.mxu0 %v384
      %537 = vmatprep.subr.bf16.mxu0 0
      %538 = vmatpush1.bf16.msra.mxu0 %v383
      %539 = vmatprep.subr.bf16.mxu0 0
      %540 = vmatpush1.bf16.msra.mxu0 %v382
      %541 = vmatprep.subr.bf16.mxu0 0
      %542 = vmatpush1.bf16.msra.mxu0 %v381
      %543 = vmatprep.subr.bf16.mxu0 0
      %544 = vmatpush2.bf16.msra.mxu0 %v396
      %545 = vmatprep.subr.bf16.mxu0 0
      %546 = vmatpush2.bf16.msra.mxu0 %v395
      %547 = vmatprep.subr.bf16.mxu0 0
      %548 = vmatpush2.bf16.msra.mxu0 %v394
      %549 = vmatprep.subr.bf16.mxu0 0
      %550 = vmatpush2.bf16.msra.mxu0 %v393
      %551 = vmatprep.subr.bf16.mxu0 0
      %552 = vmatpush2.bf16.msra.mxu0 %v392
      %553 = vmatprep.subr.bf16.mxu0 0
      %554 = vmatpush2.bf16.msra.mxu0 %v391
      %555 = vmatprep.subr.bf16.mxu0 0
      %556 = vmatpush2.bf16.msra.mxu0 %v390
      %557 = vmatprep.subr.bf16.mxu0 0
      %558 = vmatpush2.bf16.msra.mxu0 %v389
      %559 = vmatprep.mubr.bf16.mxu0 %v150
      %560 = vmatmul.mubr.bf16.gmra.mxu0 %v149
      %v561 = vpop.f32.mrf.mxu0
      %v562 = vadd.f32 %v521, %v561
      %v563 = vpop.f32.mrf.mxu0
      %v564 = vpop.f32.mrf.mxu0
      %v565 = vadd.f32 %v524, %v564
      %v566 = vpop.f32.mrf.mxu0
      %567 = vdwg.mxu0
      %v568 = vmul.f32 %v562, %v562
      %v569 = vmul.f32 %v565, %v565
      %570 = vadd.xlane.f32.xlu0 %v568
      %v571 = vpop.xlane.xlu0 %570
      %572 = vadd.xlane.f32.xlu0 %v569
      %v573 = vpop.xlane.xlu0 %572
      %v574 = vadd.f32 %v571, 1e-12
      %v575 = vadd.f32 %v573, 1e-12
      %v576 = vrsqrt.pop %v574
      %v577 = vrsqrt.pop %v575
      %v578 = vmul.f32 %v562, %v576
      %v579 = vmul.f32 %v565, %v577
      %v580 = vpack.c.bf16 %v579, %v578
      %v582 = vunpack.c.l.b16 %v580
      %v583 = vunpack.c.h.b16 %v580
      %v584 = vpack.c.b16 %v582, %v582
      %v585 = vpack.c.b16 %v583, %v583
      %588 = vst [vmem:[#allocation2] sm:$0xf] %v584
      %589 = vst [vmem:[#allocation2 + $0x4] sm:$0xf] %v585
      %vm590 = vcmask 7168
      %591 = vst.msk [vmem:[#allocation3] sm:$0xff] %vm590, 0.0
      %592 = vst.msk [vmem:[#allocation3 + $0x8] sm:$0xff] %vm590, 0.0
    $region21: #{forward.3} parent=1 // pred_fallthru
      _
    %v593 = vld [vmem:[#allocation2] sm:$0xf]
    %v594 = vld [vmem:[#allocation2 + $0x4] sm:$0xf]
    %v595 = vld [vmem:[%s2] sm:$0xf]
    %v596 = vld [vmem:[%s2 + $0x4] sm:$0xf]
    %v597 = vld [vmem:[%s2 + $0x8] sm:$0xf]
    %v598 = vld [vmem:[%s2 + $0xc] sm:$0xf]
    %v599 = vld [vmem:[%s2 + $0x10] sm:$0xf]
    %v600 = vld [vmem:[%s2 + $0x14] sm:$0xf]
    %v601 = vld [vmem:[%s2 + $0x18] sm:$0xf]
    %v602 = vld [vmem:[%s2 + $0x1c] sm:$0xf]
    %v603 = vld [vmem:[%s2 + $0x20] sm:$0xf]
    %v604 = vld [vmem:[%s2 + $0x24] sm:$0xf]
    %v605 = vld [vmem:[%s2 + $0x28] sm:$0xf]
    %v606 = vld [vmem:[%s2 + $0x2c] sm:$0xf]
    %v607 = vld [vmem:[%s2 + $0x30] sm:$0xf]
    %v608 = vld [vmem:[%s2 + $0x34] sm:$0xf]
    %v609 = vld [vmem:[%s2 + $0x38] sm:$0xf]
    %v610 = vld [vmem:[%s2 + $0x3c] sm:$0xf]
    %v611 = vld [vmem:[%s3] sm:$0x1]
    %v613 = vlaneseq
    %v614 = vshrl.u32 %v613, 7
    %v615 = vsub.s32 0, %v614
    %v616 = vrot.slane %v611, %v615
    %v620 = vunpack.c.l.b16 %v593
    %v621 = vunpack.c.l.b16 %v594
    %v622 = vpack.c.b16 %v621, %v620
    %v640 = vunpack.c.l.b16 %v595
    %v641 = vunpack.c.l.b16 %v596
    %v642 = vunpack.c.l.b16 %v597
    %v643 = vunpack.c.l.b16 %v598
    %v644 = vunpack.c.l.b16 %v599
    %v645 = vunpack.c.l.b16 %v600
    %v646 = vunpack.c.l.b16 %v601
    %v647 = vunpack.c.l.b16 %v602
    %v648 = vunpack.c.l.b16 %v603
    %v649 = vunpack.c.l.b16 %v604
    %v650 = vunpack.c.l.b16 %v605
    %v651 = vunpack.c.l.b16 %v606
    %v652 = vunpack.c.l.b16 %v607
    %v653 = vunpack.c.l.b16 %v608
    %v654 = vunpack.c.l.b16 %v609
    %v655 = vunpack.c.l.b16 %v610
    %v656 = vpack.c.b16 %v641, %v640
    %v657 = vpack.c.b16 %v643, %v642
    %v658 = vpack.c.b16 %v645, %v644
    %v659 = vpack.c.b16 %v647, %v646
    %v660 = vpack.c.b16 %v649, %v648
    %v661 = vpack.c.b16 %v651, %v650
    %v662 = vpack.c.b16 %v653, %v652
    %v663 = vpack.c.b16 %v655, %v654
    %672 = vmatprep.subr.bf16.mxu0 0
    %673 = vmatpush1.bf16.msra.mxu0 %v663
    %674 = vmatprep.subr.bf16.mxu0 0
    %675 = vmatpush1.bf16.msra.mxu0 %v662
    %676 = vmatprep.subr.bf16.mxu0 0
    %677 = vmatpush1.bf16.msra.mxu0 %v661
    %678 = vmatprep.subr.bf16.mxu0 0
    %679 = vmatpush1.bf16.msra.mxu0 %v660
    %680 = vmatprep.subr.bf16.mxu0 0
    %681 = vmatpush1.bf16.msra.mxu0 %v659
    %682 = vmatprep.subr.bf16.mxu0 0
    %683 = vmatpush1.bf16.msra.mxu0 %v658
    %684 = vmatprep.subr.bf16.mxu0 0
    %685 = vmatpush1.bf16.msra.mxu0 %v657
    %686 = vmatprep.subr.bf16.mxu0 0
    %687 = vmatpush1.bf16.msra.mxu0 %v656
    %688 = vmatprep.subr.bf16.mxu0 0
    %689 = vmatpush2.bf16.msra.mxu0 0
    %690 = vmatprep.subr.bf16.mxu0 0
    %691 = vmatpush2.bf16.msra.mxu0 0
    %692 = vmatprep.subr.bf16.mxu0 0
    %693 = vmatpush2.bf16.msra.mxu0 0
    %694 = vmatprep.subr.bf16.mxu0 0
    %695 = vmatpush2.bf16.msra.mxu0 0
    %696 = vmatprep.subr.bf16.mxu0 0
    %697 = vmatpush2.bf16.msra.mxu0 0
    %698 = vmatprep.subr.bf16.mxu0 0
    %699 = vmatpush2.bf16.msra.mxu0 0
    %700 = vmatprep.subr.bf16.mxu0 0
    %701 = vmatpush2.bf16.msra.mxu0 0
    %702 = vmatprep.subr.bf16.mxu0 0
    %703 = vmatpush2.bf16.msra.mxu0 0
    %704 = vmatprep.mubr.bf16.mxu0 0
    %705 = vmatmul.mubr.bf16.gmra.mxu0 %v622
    %v706 = vpop.f32.mrf.mxu0
    %v707 = vadd.f32 %v616, %v706
    %v708 = vpop.f32.mrf.mxu0
    %v709 = vpop.f32.mrf.mxu0
    %v710 = vadd.f32 %v616, %v709
    %v711 = vpop.f32.mrf.mxu0
    %712 = vdwg.mxu0
    %v713 = vmul.f32 %v707, 1.442695
    %v714 = vpow.pop %v713
    %v715 = vmul.f32 %v710, 1.442695
    %v716 = vpow.pop %v715
    %v717 = vld [vmem:[#allocation3] sm:$0xff]
    %v718 = vld [vmem:[#allocation3 + $0x8] sm:$0xff]
    %719 = vadd.xlane.f32.xlu0 %v714
    %v720 = vpop.xlane.xlu0 %719
    %721 = vadd.xlane.f32.xlu0 %v716
    %v722 = vpop.xlane.xlu0 %721
    %v723 = vadd.f32 %v717, %v720
    %v724 = vadd.f32 %v718, %v722
    %vm725 = vcmask 7168
    %726 = vst.msk [vmem:[#allocation3] sm:$0xff] %vm725, %v723
    %727 = vst.msk [vmem:[#allocation3 + $0x8] sm:$0xff] %vm725, %v724
    %v728 = vld [vmem:[#allocation3] sm:$0xff]
    %v729 = vld [vmem:[#allocation3 + $0x8] sm:$0xff]
    %v730 = vrcp.pop %v728
    %v731 = vrcp.pop %v729
    %733 = vset.pattern.permute.xlu0 0
    %734 = vperm.xlu0 %733, %v730
    %v735 = vpop.permute.xlu0 %734
    %738 = vset.pattern.permute.xlu0 0
    %739 = vperm.xlu0 %738, %v731
    %v740 = vpop.permute.xlu0 %739
    %v742 = vmul.f32 %v714, %v735
    %v743 = vmul.f32 %v716, %v740
    %744 = vst [vmem:[%s4] sm:$0xff] %v742
    %745 = vst [vmem:[%s4 + $0x8] sm:$0xff] %v743
    // Predicated region
    $region22: #{forward.3} parent=1 // pred_check
      _
    $region23: #{forward.3} parent=1 // pred_check_branch
      %747 = sbr.rel (0) target = $region25
    $region24: #{forward.3} parent=1 // pred_region
      _
    $region25: #{forward.3} parent=1 // pred_fallthru
      _
    // Predicated region
    $region26: #{forward.3} parent=1 // pred_check
      _
    $region27: #{forward.3} parent=1 // pred_check_branch
      %749 = sbr.rel (0) target = $region29
    $region28: #{forward.3} parent=1 // pred_region
      %s751 = ssub.s32 256, 256
      %752 = vsyncadd [#allocation4], %s751
      %s753 = sshll.u32 [#allocation3], 4
      %s754 = int_to_ptr.vmem [resolvable:$true] %s753
      %759 = dma.vmem_to_hbm [thread:$0]  %s754, 256, %s5, [#allocation4], 128, 128, 8
    $region29: #{forward.3} parent=1 // pred_fallthru
      _
    // Predicated region
    $region30: #{forward.3} parent=1 // pred_check
      _
    $region31: #{forward.3} parent=1 // pred_check_branch
      %761 = sbr.rel (0) target = $region33
    $region32: #{forward.3} parent=1 // pred_region
      _
    $region33: #{forward.3} parent=1 // pred_fallthru
      _
    // Predicated region
    $region34: #{forward.3} parent=1 // pred_check
      _
    $region35: #{forward.3} parent=1 // pred_check_branch
      %763 = sbr.rel (0) target = $region37
    $region36: #{forward.3} parent=1 // pred_region
      %764 = dma.done [#allocation4], 256
    $region37: #{forward.3} parent=1 // pred_fallthru
      _
    %765 = vsyncpa [#allocation4], 1

</llo_original>
